<compile_context>
chip_gen: v7x
topology: tpu7x:2x2x1
jax: 0.10.0
libtpu: 0.0.40
codegen_flags: <defaults>
</compile_context>

<pallas_src>
import numpy as np
import jax
import jax.numpy as jnp
from jax.experimental import pallas as pl
from jax.experimental.pallas import tpu as pltpu

_EPS = 1e-5          # InstanceNorm3d default
_NEG_SLOPE = 0.01    # LeakyReLU default


def _round_up(x, m):
    return ((x + m - 1) // m) * m


def _vmem_limit_bytes():
    """Generation-aware scoped-VMEM request (~75% of physical, capped)."""
    try:
        cap = int(pltpu.get_tpu_info().vmem_capacity_bytes)
    except Exception:
        cap = 64 * 1024 * 1024            # conservative fallback (v7x physical)
    return max(16 * 1024 * 1024, min(cap * 3 // 4, 100 * 1024 * 1024))


# ----------------------------------------------------------------------------
# Pallas kernel 1: 1x1x1 projection conv (no bias) + InstanceNorm + LeakyReLU
# ----------------------------------------------------------------------------
def _make_proj_kernel(inv_n):
    def kernel(x_ref, w_ref, o_ref):
        # x_ref: (Cin, N) f32  (cast to bf16 in-kernel -> no separate cast pass)
        # w_ref: (Cout, Cin) f32
        # o_ref: (Cout, N) bf16
        xb = x_ref[...].astype(jnp.bfloat16)
        wb = w_ref[...].astype(jnp.bfloat16)
        y = jnp.dot(wb, xb, preferred_element_type=jnp.float32)     # MXU, f32 acc
        # two-pass InstanceNorm (all N positions are valid here)
        mean = jnp.sum(y, axis=-1, keepdims=True) * inv_n
        diff = y - mean
        var = jnp.sum(diff * diff, axis=-1, keepdims=True) * inv_n
        yn = diff * jax.lax.rsqrt(var + _EPS)
        o_ref[...] = jnp.where(yn >= 0.0, yn, _NEG_SLOPE * yn).astype(o_ref.dtype)
    return kernel


def proj_in_lrelu(x, w):
    """x: (B, Cin, N) f32, w: (Cout, Cin) f32 -> (B, Cout, N) bf16."""
    B, Cin, N = x.shape
    Cout = w.shape[0]
    # TODO(synk): at these shapes per-call/per-step overhead dominates; the real
    # fix is folding proj+resize into the fusion kernel (see module TODO).
    return pl.pallas_call(
        _make_proj_kernel(1.0 / float(N)),
        out_shape=jax.ShapeDtypeStruct((B, Cout, N), jnp.bfloat16),
        grid_spec=pltpu.PrefetchScalarGridSpec(
            num_scalar_prefetch=0,
            grid=(B,),
            in_specs=[
                pl.BlockSpec((pl.Squeezed(), Cin, N), lambda b: (b, 0, 0)),
                pl.BlockSpec((Cout, Cin), lambda b: (0, 0)),
            ],
            out_specs=pl.BlockSpec((pl.Squeezed(), Cout, N), lambda b: (b, 0, 0)),
        ),
        compiler_params=pltpu.CompilerParams(
            dimension_semantics=("parallel",),
            vmem_limit_bytes=_vmem_limit_bytes()),
    )(x, w)


# ----------------------------------------------------------------------------
# Pallas kernel 2: 3x3x3 fusion conv (padding=1, bias dropped) + IN + LeakyReLU
# ----------------------------------------------------------------------------
def _fusion_masks(D, H, W, n_pad):
    """Boundary masks for the shift/mask formulation (flat p = d*H*W + h*W + w).

    wmask[0/1]: output positions where the w-1 / w+1 tap is inside the volume.
    dh[g]     : output positions where the (kd,kh) taps of group g=kd*3+kh are
                inside the volume (and p < D*H*W); dh[4] == "p is a real voxel".
    deltas[g] : flat offset (kd-1)*H*W + (kh-1)*W of group g.
    """
    n = D * H * W
    p = np.arange(n_pad)
    w_ = p % W
    h_ = (p // W) % H
    d_ = p // (H * W)
    valid = p < n
    wmask = np.stack([(w_ >= 1) & valid,
                      (w_ <= W - 2) & valid]).astype(np.float32)
    dh = np.zeros((9, n_pad), np.float32)
    deltas = []
    for kd in range(3):
        for kh in range(3):
            g = kd * 3 + kh
            dd = d_ + kd - 1
            hh = h_ + kh - 1
            dh[g] = ((dd >= 0) & (dd < D) & (hh >= 0) & (hh < H) & valid)
            deltas.append((kd - 1) * H * W + (kh - 1) * W)
    return (jnp.asarray(wmask, dtype=jnp.bfloat16),
            jnp.asarray(dh, dtype=jnp.float32),
            tuple(deltas))


def _make_fusion_kernel(deltas, ct, inv_n):
    def kernel(x_ref, w_ref, wm_ref, dh_ref, o_ref):
        # x_ref : (Cin, Npad) bf16   flat voxels of one batch element
        # w_ref : (9, ct, 3*Cin) f32 grouped weights (g=kd*3+kh, K = kw*Cin+ci)
        # wm_ref: (2, Npad) bf16     w-boundary masks for the +-1 lane shifts
        # dh_ref: (9, Npad) f32      d/h-boundary masks per group
        # o_ref : (ct, Npad) f32     final flat layout, Npad multiple of 128
        x = x_ref[...]
        npad = x.shape[-1]
        wm = wm_ref[...]
        dh = dh_ref[...]

        # kw-stacked slab: rows [x[q-1]*m_w0 ; x[q] ; x[q+1]*m_w2], zero end fill.
        zc = jnp.zeros((x.shape[0], 1), dtype=x.dtype)
        xm1 = jnp.concatenate([zc, x[:, :npad - 1]], axis=1)
        xp1 = jnp.concatenate([x[:, 1:], zc], axis=1)
        s = jnp.concatenate(
            [xm1 * wm[0:1, :], x, xp1 * wm[1:2, :]], axis=0)        # (3Cin, Npad)

        acc = jnp.zeros((ct, npad), jnp.float32)
        for g, dlt in enumerate(deltas):                            # static unroll (9)
            if dlt >= npad or -dlt >= npad:
                continue
            wg = w_ref[g].astype(s.dtype)                           # (ct, 3Cin) bf16
            y = jnp.dot(wg, s, preferred_element_type=jnp.float32)  # K = 3*Cin
            # output-side shift by dlt with zero fill, then d/h boundary mask
            if dlt > 0:
                z = jnp.concatenate(
                    [y[:, dlt:], jnp.zeros((ct, dlt), jnp.float32)], axis=1)
            elif dlt < 0:
                z = jnp.concatenate(
                    [jnp.zeros((ct, -dlt), jnp.float32), y[:, :npad + dlt]], axis=1)
            else:
                z = y
            acc = acc + dh[g:g + 1, :] * z

        # Two-pass InstanceNorm (stats over the N valid voxels only) + LeakyReLU.
        valid = dh[4:5, :]                 # center group mask == (p < N)
        mean = jnp.sum(acc, axis=-1, keepdims=True) * inv_n   # tail lanes are 0
        diff = (acc - mean) * valid
        var = jnp.sum(diff * diff, axis=-1, keepdims=True) * inv_n
        yn = (acc - mean) * jax.lax.rsqrt(var + _EPS)
        o_ref[...] = jnp.where(yn >= 0.0, yn, _NEG_SLOPE * yn).astype(o_ref.dtype)
    return kernel


def fusion_conv_in_lrelu(x, w27):
    """x: (B, Cin, D, H, W) bf16/f32, w27: (27, Cout, Cin) f32 (t = kd*9+kh*3+kw).

    3x3x3 conv, padding=1 (bias omitted: cancelled by the following
    InstanceNorm mean subtraction), then InstanceNorm3d + LeakyReLU.
    Returns (B, Cout, D, H, W) f32.
    """
    B, Cin, D, H, W = x.shape
    Cout = w27.shape[1]
    n = D * H * W
    n_pad = _round_up(n, 128)

    xf = x.reshape(B, Cin, n).astype(jnp.bfloat16)
    if n_pad != n:
        xf = jnp.pad(xf, ((0, 0), (0, 0), (0, n_pad - n)))

    # (27, Cout, Cin) -> (9, Cout, 3*Cin): group g = kd*3+kh, K index = kw*Cin+ci
    wk = (w27.reshape(3, 3, 3, Cout, Cin)
             .transpose(0, 1, 3, 2, 4)
             .reshape(9, Cout, 3 * Cin)
             .astype(jnp.float32))
    wmask, dhmask, deltas = _fusion_masks(D, H, W, n_pad)

    # Cout-split grid axis -> >=2 independent parallel steps even when B == 1
    # (v7x has 2 TensorCores).  Weights stay f32 so the (ct, 3*Cin) block is
    # layout-legal for ct = Cout // 2; they are cast to bf16 inside the kernel.
    ct = Cout // 2 if (Cout >= 16 and Cout % 16 == 0) else Cout
    G = Cout // ct

    y = pl.pallas_call(
        _make_fusion_kernel(deltas, ct, 1.0 / float(n)),
        out_shape=jax.ShapeDtypeStruct((B, Cout, n_pad), jnp.float32),
        grid_spec=pltpu.PrefetchScalarGridSpec(
            num_scalar_prefetch=0,
            grid=(B, G),
            in_specs=[
                pl.BlockSpec((pl.Squeezed(), Cin, n_pad), lambda b, g: (b, 0, 0)),
                pl.BlockSpec((9, ct, 3 * Cin), lambda b, g: (0, g, 0)),
                pl.BlockSpec((2, n_pad), lambda b, g: (0, 0)),
                pl.BlockSpec((9, n_pad), lambda b, g: (0, 0)),
            ],
            out_specs=pl.BlockSpec((pl.Squeezed(), ct, n_pad),
                                   lambda b, g: (b, g, 0)),
        ),
        compiler_params=pltpu.CompilerParams(
            dimension_semantics=("parallel", "parallel"),
            vmem_limit_bytes=_vmem_limit_bytes()),
    )(xf, wk, wmask, dhmask)

    if n_pad != n:
        y = y[:, :, :n]
    return y.reshape(B, Cout, D, H, W)


# ----------------------------------------------------------------------------
# Plain-JAX glue: trilinear resize (align_corners=False), NCDHW layout
# ----------------------------------------------------------------------------
def _linear_interp_matrix(out_size, in_size):
    """Rows = PyTorch align_corners=False linear interpolation weights."""
    if out_size == in_size:
        return jnp.eye(in_size, dtype=jnp.float32)
    scale = in_size / out_size
    src = (np.arange(out_size, dtype=np.float64) + 0.5) * scale - 0.5
    src = np.clip(src, 0.0, in_size - 1)
    lo = np.minimum(np.floor(src).astype(np.int64), in_size - 1)
    hi = np.minimum(lo + 1, in_size - 1)
    frac = (src - lo).astype(np.float32)
    M = np.zeros((out_size, in_size), dtype=np.float32)
    M[np.arange(out_size), lo] += (1.0 - frac)
    M[np.arange(out_size), hi] += frac
    return jnp.asarray(M)


def trilinear_resize(x, target_size):
    """x: (B, C, D, H, W) -> (B, C, Dt, Ht, Wt); matches F.interpolate
    (mode='trilinear', align_corners=False).  Output keeps x.dtype."""
    B, C, D, H, W = x.shape
    Dt, Ht, Wt = target_size
    Mw = _linear_interp_matrix(Wt, W)
    Mh = _linear_interp_matrix(Ht, H)
    Md = _linear_interp_matrix(Dt, D)
    y = jnp.einsum('wu,bcdhu->bcdhw', Mw, x)
    y = jnp.einsum('ht,bcdtw->bcdhw', Mh, y)
    y = jnp.einsum('ds,bcshw->bcdhw', Md, y)
    return y.astype(x.dtype)


# ----------------------------------------------------------------------------
# Parameters (deterministic, synthetic init — no checkpoint loading)
# ----------------------------------------------------------------------------
def init_params(key, encoder_channels, decoder_channels):
    params = {"decoder_channels": decoder_channels,
              "encoder_channels": list(encoder_channels),
              "pyramid": [], "fusion": {}}
    keys = jax.random.split(key, len(encoder_channels) + 1)
    for i, ch in enumerate(encoder_channels):
        if ch == decoder_channels:
            params["pyramid"].append(None)             # nn.Identity
        else:
            # Conv3d(ch, dec, 1, bias=False) weight, stored as (Cout, Cin)
            w = jax.random.normal(keys[i], (decoder_channels, ch),
                                  jnp.float32) * (1.0 / np.sqrt(ch))
            params["pyramid"].append({"w": w})
    n = len(encoder_channels)
    cin = decoder_channels * n
    # Conv3d(dec*n, dec, 3, padding=1) weight, stored as (27, Cout, Cin);
    # tap t = kd*9 + kh*3 + kw  <->  PyTorch weight[:, :, kd, kh, kw].
    # The PyTorch layer also has a bias, but InstanceNorm3d(affine=False)
    # subtracts the per-channel mean right after, so the bias has exactly zero
    # effect on the output — it is omitted.
    wf = jax.random.normal(keys[-1], (27, decoder_channels, cin),
                           jnp.float32) * (1.0 / np.sqrt(27 * cin))
    params["fusion"] = {"w": wf}
    return params


# ----------------------------------------------------------------------------
# Forward pass (mirrors HierarchicalSkipConnection.forward, main path)
# ----------------------------------------------------------------------------
def hierarchical_skip_forward(encoder_features, target_size, params):
    """encoder_features: list of NCDHW arrays -> NCDHW (B, dec, *target_size) f32."""
    dec = params["decoder_channels"]
    tgt = tuple(int(t) for t in target_size)
    pyramid = []
    for feat, proj in zip(encoder_features, params["pyramid"]):
        B, C, D, H, W = feat.shape
        if proj is not None:
            # 1x1x1 conv + InstanceNorm3d + LeakyReLU — Pallas kernel (bf16 out)
            y = proj_in_lrelu(feat.reshape(B, C, D * H * W), proj["w"])
            y = y.reshape(B, dec, D, H, W)
        else:
            y = feat.astype(jnp.bfloat16)               # nn.Identity
        if (D, H, W) != tgt:
            # TODO(synk): plain-JAX trilinear resize (exact separable interp).
            y = trilinear_resize(y, tgt)
        pyramid.append(y.astype(jnp.bfloat16))
    concat = jnp.concatenate(pyramid, axis=1)            # (B, dec*n, Dt,Ht,Wt) bf16
    # 3x3x3 fusion conv + InstanceNorm3d + LeakyReLU — Pallas kernel
    return fusion_conv_in_lrelu(concat, params["fusion"]["w"])


# ----------------------------------------------------------------------------
# Plain-JAX reference (for the in-script correctness check)
# ----------------------------------------------------------------------------
def _ref_in_lrelu(y):
    mean = jnp.mean(y, axis=(2, 3, 4), keepdims=True)
    var = jnp.mean(jnp.square(y - mean), axis=(2, 3, 4), keepdims=True)
    yn = (y - mean) / jnp.sqrt(var + _EPS)
    return jnp.where(yn >= 0, yn, _NEG_SLOPE * yn)


def _ref_fusion_conv3x3(x, w):
    B, C, D, H, W = x.shape
    xp = jnp.pad(x, ((0, 0), (0, 0), (1, 1), (1, 1), (1, 1)))
    out = jnp.zeros((B, w.shape[1], D, H, W), jnp.float32)
    t = 0
    for kd in range(3):
        for kh in range(3):
            for kw in range(3):
                xs = xp[:, :, kd:kd + D, kh:kh + H, kw:kw + W]
                out = out + jnp.einsum('oc,bcdhw->bodhw', w[t], xs,
                                       precision=jax.lax.Precision.HIGHEST)
                t += 1
    return out


def _reference_forward(encoder_features, target_size, params):
    tgt = tuple(int(t) for t in target_size)
    pyramid = []
    for feat, proj in zip(encoder_features, params["pyramid"]):
        if proj is not None:
            y = jnp.einsum('oc,bcdhw->bodhw', proj["w"], feat,
                           precision=jax.lax.Precision.HIGHEST)
            y = _ref_in_lrelu(y)
        else:
            y = feat
        if y.shape[2:] != tgt:
            y = trilinear_resize(y, tgt)
        pyramid.append(y)
    concat = jnp.concatenate(pyramid, axis=1)
    return _ref_in_lrelu(_ref_fusion_conv3x3(concat, params["fusion"]["w"]))


# ----------------------------------------------------------------------------
if __name__ == "__main__":
    key = jax.random.PRNGKey(0)
    k1, k2, k3, kp = jax.random.split(key, 4)

    encoder_channels = [8, 16, 32]     # [proj 8->16, Identity, proj 32->16 + resize]
    decoder_channels = 16
    target_size = (8, 8, 8)
    B = 2

    # Encoder features in PyTorch NCDHW layout (last one needs trilinear upsample)
    f0 = jax.random.normal(k1, (B, 8, 8, 8, 8), jnp.float32)
    f1 = jax.random.normal(k2, (B, 16, 8, 8, 8), jnp.float32)
    f2 = jax.random.normal(k3, (B, 32, 4, 4, 4), jnp.float32)
    feats = [f0, f1, f2]

    params = init_params(kp, encoder_channels, decoder_channels)

    out = hierarchical_skip_forward(feats, target_size, params)
    out = jax.block_until_ready(out)
    assert out.shape == (B, decoder_channels, *target_size), out.shape
    assert bool(jnp.all(jnp.isfinite(out)))

    # Correctness check vs. a plain-JAX f32 reference of the module (tolerance
    # sized for bf16 operands/intermediates; layout bugs give O(1) errors).
    ref = jax.block_until_ready(_reference_forward(feats, target_size, params))
    max_err = float(jnp.max(jnp.abs(out - ref)))
    assert max_err < 0.25, f"max abs err vs reference: {max_err}"

    print("KERNEL_OK")
</pallas_src>

<mosaic_0001>
module attributes {stable_mosaic.version = 11 : i64} {
  func.func @kernel(%arg0: i32, %arg1: memref<1x8x512xf32, #tpu.memory_space<vmem>>, %arg2: memref<16x8xf32, #tpu.memory_space<vmem>>, %arg3: memref<1x16x512xbf16, #tpu.memory_space<vmem>>) attributes {dimension_semantics = [#tpu.dimension_semantics<parallel>], iteration_bounds = array<i64: 2>, scalar_prefetch = 0 : i64, scratch_operands = 0 : i64, tpu.core_type = #tpu.core_type<tc>, window_params = [{transform_indices = @transform_0, window_bounds = array<i64: 1, 8, 512>}, {pipeline_mode = #tpu.pipeline_mode<synchronous>, transform_indices = @transform_1, window_bounds = array<i64: 16, 8>}, {transform_indices = @transform_2, window_bounds = array<i64: 1, 16, 512>}]} {
    %c0 = arith.constant 0 : index
    %c0_0 = arith.constant 0 : index
    %c0_1 = arith.constant 0 : index
    %0 = vector.load %arg1[%c0, %c0_0, %c0_1] : memref<1x8x512xf32, #tpu.memory_space<vmem>>, vector<1x8x512xf32>
    %1 = vector.shape_cast %0 : vector<1x8x512xf32> to vector<8x512xf32>
    %2 = arith.truncf %1 : vector<8x512xf32> to vector<8x512xbf16>
    %c0_2 = arith.constant 0 : index
    %c0_3 = arith.constant 0 : index
    %3 = vector.load %arg2[%c0_2, %c0_3] : memref<16x8xf32, #tpu.memory_space<vmem>>, vector<16x8xf32>
    %4 = arith.truncf %3 : vector<16x8xf32> to vector<16x8xbf16>
    %cst = arith.constant dense<0.000000e+00> : vector<16x512xf32>
    %5 = tpu.matmul %4, %2, %cst {dimension_numbers = #tpu.dot_dimension_numbers<[1], [0], [0], [1], [0, 0, 1, 1], [], []>} : vector<16x8xbf16>, vector<8x512xbf16>, vector<16x512xf32> -> vector<16x512xf32>
    %cst_4 = arith.constant dense<0.000000e+00> : vector<16xf32>
    %6 = vector.multi_reduction <add>, %5, %cst_4 [1] : vector<16x512xf32> to vector<16xf32>
    %7 = vector.shape_cast %6 : vector<16xf32> to vector<16x1xf32>
    %cst_5 = arith.constant 0.001953125 : f32
    %8 = vector.broadcast %cst_5 : f32 to vector<16x1xf32>
    %9 = arith.mulf %7, %8 : vector<16x1xf32>
    %10 = vector.broadcast %9 : vector<16x1xf32> to vector<16x512xf32>
    %11 = arith.subf %5, %10 : vector<16x512xf32>
    %12 = arith.mulf %11, %11 : vector<16x512xf32>
    %cst_6 = arith.constant dense<0.000000e+00> : vector<16xf32>
    %13 = vector.multi_reduction <add>, %12, %cst_6 [1] : vector<16x512xf32> to vector<16xf32>
    %14 = vector.shape_cast %13 : vector<16xf32> to vector<16x1xf32>
    %cst_7 = arith.constant 0.001953125 : f32
    %15 = vector.broadcast %cst_7 : f32 to vector<16x1xf32>
    %16 = arith.mulf %14, %15 : vector<16x1xf32>
    %cst_8 = arith.constant 9.99999974E-6 : f32
    %17 = vector.broadcast %cst_8 : f32 to vector<16x1xf32>
    %18 = arith.addf %16, %17 : vector<16x1xf32>
    %19 = math.rsqrt %18 : vector<16x1xf32>
    %20 = vector.broadcast %19 : vector<16x1xf32> to vector<16x512xf32>
    %21 = arith.mulf %11, %20 : vector<16x512xf32>
    %cst_9 = arith.constant 0.000000e+00 : f32
    %22 = vector.broadcast %cst_9 : f32 to vector<16x512xf32>
    %23 = arith.cmpf oge, %21, %22 : vector<16x512xf32>
    %cst_10 = arith.constant 0.00999999977 : f32
    %24 = vector.broadcast %cst_10 : f32 to vector<16x512xf32>
    %25 = arith.mulf %24, %21 : vector<16x512xf32>
    %26 = arith.select %23, %21, %25 : vector<16x512xi1>, vector<16x512xf32>
    %27 = arith.truncf %26 : vector<16x512xf32> to vector<16x512xbf16>
    %c0_11 = arith.constant 0 : index
    %c0_12 = arith.constant 0 : index
    %c0_13 = arith.constant 0 : index
    %28 = vector.load %arg3[%c0_11, %c0_12, %c0_13] : memref<1x16x512xbf16, #tpu.memory_space<vmem>>, vector<1x16x512xbf16>
    %29 = vector.shape_cast %28 : vector<1x16x512xbf16> to vector<16x512xbf16>
    %30 = vector.shape_cast %27 : vector<16x512xbf16> to vector<1x16x512xbf16>
    tpu.vector_store %arg3[%c0_11, %c0_12, %c0_13], %30 {strides = array<i32>} : memref<1x16x512xbf16, #tpu.memory_space<vmem>>, vector<1x16x512xbf16>,
    return
  }
  func.func @transform_0(%arg0: i32) -> (i32, i32, i32) {
    %c0_i32 = arith.constant 0 : i32
    %c0_i32_0 = arith.constant 0 : i32
    %c0_i32_1 = arith.constant 0 : i32
    return %arg0, %c0_i32, %c0_i32_0 : i32, i32, i32
  }
  func.func @transform_1(%arg0: i32) -> (i32, i32) {
    %c0_i32 = arith.constant 0 : i32
    %c0_i32_0 = arith.constant 0 : i32
    %c0_i32_1 = arith.constant 0 : i32
    return %c0_i32, %c0_i32_0 : i32, i32
  }
  func.func @transform_2(%arg0: i32) -> (i32, i32, i32) {
    %c0_i32 = arith.constant 0 : i32
    %c0_i32_0 = arith.constant 0 : i32
    %c0_i32_1 = arith.constant 0 : i32
    return %arg0, %c0_i32, %c0_i32_0 : i32, i32, i32
  }
}

</mosaic_0001>

<llo_original>
// kernel: tpu_custom_call.1
$region0: #{tpu_custom_call.1}
  #allocation0 [shape = 'u32[]', space=smem, size = 0x4, offset = 0x4, fixed_abs, tag = 'smem constant byte address 0x4 - core index']
  #allocation1 [shape = 'u32[144,128]{1,0:T(1,128)}', space=vmem, size = 0x12000, scoped, tag = 'internal scratch']
  %s0 = inlined_call_operand.hbm [shape: f32[2,8,512], index: 0, kind: input, shape index: {}]
  %s1 = inlined_call_operand.vmem [shape: f32[16,8], index: 1, kind: input, shape index: {}]
  %s2 = inlined_call_operand.hbm [shape: bf16[2,16,512], index: 2, kind: output, shape index: {}]
  %s3 = sld [smem:[#allocation0]]
  $region45: #{tpu_custom_call.1} parent=0
    _
  %s5 = ssub.s32 1, %s3
  %s6 = scalar_select 0, %s5, %s3
  $region1: #{tpu_custom_call.1} parent=0
    #allocation2 [shape = 'u8[32768]{0}', space=vmem, size = 0x8000, scoped, tag = 'input window, operand 0']
    #allocation3 [shape = 's32[2]{0}', space=sflag, size = 0x8, scoped, tag = 'scoped memory for tpu_custom_call.1']
    #allocation4 [shape = 's32[2]{0}', space=sflag, size = 0x8, scoped, tag = 'scoped memory for tpu_custom_call.1']
    #allocation5 [shape = 'u8[32768]{0}', space=vmem, size = 0x8000, scoped, tag = 'output window, operand 0']
    %7 = vsyncpa [#allocation3], 0
    %s8 = scalar_lea.sflag [#allocation3], 1
    %9 = vsyncpa %s8, 0
    %10 = vsyncpa [#allocation4], 0
    %s11 = scalar_lea.sflag [#allocation4], 1
    %12 = vsyncpa %s11, 0
    loop: start=0, step=1, limit=4
    $region2: #{tpu_custom_call.1} parent=1 // loop_pre_header
      _
    $region3: #{tpu_custom_call.1} parent=1 // loop_header
      %s14 = sphi 0, %s18
      %p15 = scmp.ge.s32.totalorder %s14, 4
      %s24 = sphi 0, %s26
      %s27 = sphi 0, %s24
      %s28 = sphi 0, %s27
      %s44 = sphi 0, %s28
      %s48 = sphi 0, %s48
      %s50 = sphi 0, %s48
      %s51 = sphi 0, %s50
      %s65 = sphi 0, %s51
      %s71 = sphi 0, %s73
      %s74 = sphi 0, %s71
      %s75 = sphi 0, %s74
      %s91 = sphi 0, %s75
    $region4: #{tpu_custom_call.1} parent=1 // loop_header_branch
      %17 = sbr.rel (%p15) target = $region8
    $region5: #{tpu_custom_call.1} parent=1 // loop_body
      %s19 = ssub.s32 %s14, 1
      %s20 = ssub.s32 %s14, 2
      %s21 = sadd.s32 %s14, 1
      %s22 = ssub.s32 %s14, %s21
      %p23 = scmp.eq.s32.totalorder %s22, 0
      %s25 = sadd.s32 %s24, 1
      %s26 = scalar_select %p23, %s24, %s25
      %p29 = pneg %p23
      %p30 = scmp.eq.s32.totalorder %s14, 1
      %p31 = por %p29, %p30
      %p32 = scmp.ne.s32.totalorder %s24, %s27
      %p33 = scmp.eq.s32.totalorder %s14, 0
      %p34 = por %p32, %p33
      %p35 = scmp.ne.s32.totalorder %s24, %s27
      %p36 = scmp.eq.s32.totalorder %s19, 1
      %p37 = por %p35, %p36
      %p38 = scmp.ne.s32.totalorder %s27, %s28
      %p39 = scmp.eq.s32.totalorder %s19, 0
      %p40 = por %p38, %p39
      %p41 = scmp.ne.s32.totalorder %s27, %s28
      %p42 = scmp.eq.s32.totalorder %s20, 1
      %p43 = por %p41, %p42
      %p45 = scmp.ne.s32.totalorder %s28, %s44
      %p46 = scmp.eq.s32.totalorder %s20, 0
      %p47 = por %p45, %p46
      %s49 = sadd.s32 %s48, 1
      %p52 = scmp.eq.s32.totalorder %s14, 1
      %p53 = scmp.ne.s32.totalorder %s48, %s50
      %p54 = scmp.eq.s32.totalorder %s14, 0
      %p55 = por %p53, %p54
      %p56 = scmp.ne.s32.totalorder %s48, %s50
      %p57 = scmp.eq.s32.totalorder %s19, 1
      %p58 = por %p56, %p57
      %p59 = scmp.ne.s32.totalorder %s50, %s51
      %p60 = scmp.eq.s32.totalorder %s19, 0
      %p61 = por %p59, %p60
      %p62 = scmp.ne.s32.totalorder %s50, %s51
      %p63 = scmp.eq.s32.totalorder %s20, 1
      %p64 = por %p62, %p63
      %p66 = scmp.ne.s32.totalorder %s51, %s65
      %p67 = scmp.eq.s32.totalorder %s20, 0
      %p68 = por %p66, %p67
      %s69 = ssub.s32 %s14, %s21
      %p70 = scmp.eq.s32.totalorder %s69, 0
      %s72 = sadd.s32 %s71, 1
      %s73 = scalar_select %p70, %s71, %s72
      %p76 = pneg %p70
      %p77 = scmp.eq.s32.totalorder %s14, 1
      %p78 = por %p76, %p77
      %p79 = scmp.ne.s32.totalorder %s71, %s74
      %p80 = scmp.eq.s32.totalorder %s14, 0
      %p81 = por %p79, %p80
      %p82 = scmp.ne.s32.totalorder %s71, %s74
      %p83 = scmp.eq.s32.totalorder %s19, 1
      %p84 = por %p82, %p83
      %p85 = scmp.ne.s32.totalorder %s74, %s75
      %p86 = scmp.eq.s32.totalorder %s19, 0
      %p87 = por %p85, %p86
      %p88 = scmp.ne.s32.totalorder %s74, %s75
      %p89 = scmp.eq.s32.totalorder %s20, 1
      %p90 = por %p88, %p89
      %p92 = scmp.ne.s32.totalorder %s75, %s91
      %p93 = scmp.eq.s32.totalorder %s20, 0
      %p94 = por %p92, %p93
      %p95 = scmp.le.s32.totalorder 1, %s14
      %p96 = scmp.lt.s32.totalorder %s14, 3
      %p97 = pnand %p95, %p96
      %p98 = pneg %p97
      // Predicated region
      $region9: #{tpu_custom_call.1} parent=5 // pred_check
        _
      $region10: #{tpu_custom_call.1} parent=5 // pred_check_branch
        %100 = sbr.rel (%p97) target = $region12
      $region11: #{tpu_custom_call.1} parent=5 // pred_region
        %s101 = ssub.s32 %s14, 1
        // Predicated region
        $region13: #{tpu_custom_call.1} parent=11 // pred_check
          %p102 = pneg %p61
        $region14: #{tpu_custom_call.1} parent=11 // pred_check_branch
          %104 = sbr.rel (%p102) target = $region16
        $region15: #{tpu_custom_call.1} parent=11 // pred_region
          _
        $region16: #{tpu_custom_call.1} parent=11 // pred_fallthru
          _
      $region12: #{tpu_custom_call.1} parent=5 // pred_fallthru
        _
      %p105 = scmp.lt.s32.totalorder %s14, 2
      // Predicated region
      $region17: #{tpu_custom_call.1} parent=5 // pred_check
        %p106 = pneg %p105
      $region18: #{tpu_custom_call.1} parent=5 // pred_check_branch
        %108 = sbr.rel (%p106) target = $region20
      $region19: #{tpu_custom_call.1} parent=5 // pred_region
        // Predicated region
        $region21: #{tpu_custom_call.1} parent=19 // pred_check
          %p109 = pneg %p34
        $region22: #{tpu_custom_call.1} parent=19 // pred_check_branch
          %111 = sbr.rel (%p109) target = $region24
        $region23: #{tpu_custom_call.1} parent=19 // pred_region
          %s112 = sand.u32 %s24, 1
          %s113 = scalar_lea.sflag [#allocation3], %s112
          %s114 = sand.u32 %s24, 1
          %s115 = smul.addr %s114, 32
          %s116 = scalar_lea.vmem [#allocation2], %s115
          %s118 = ssub.s32 512, 512
          %119 = vsyncadd %s113, %s118
          %s120 = smul.addr %s14, 4
          %s121 = smul.addr %s120, 128
          %s122 = scalar_lea.hbm %s0, %s121
          %s124 = sshll.u32 %s116, 4
          %s125 = int_to_ptr.vmem [resolvable:$true] %s124
          %127 = dma.hbm_to_vmem [thread:$0]  %s122, 512, %s125, %s113
        $region24: #{tpu_custom_call.1} parent=19 // pred_fallthru
          _
      $region20: #{tpu_custom_call.1} parent=5 // pred_fallthru
        _
      %p128 = scmp.le.s32.totalorder 1, %s14
      %p129 = scmp.lt.s32.totalorder %s14, 3
      %p130 = pnand %p128, %p129
      %p131 = pneg %p130
      // Predicated region
      $region25: #{tpu_custom_call.1} parent=5 // pred_check
        _
      $region26: #{tpu_custom_call.1} parent=5 // pred_check_branch
        %133 = sbr.rel (%p130) target = $region28
      $region27: #{tpu_custom_call.1} parent=5 // pred_region
        %s134 = ssub.s32 %s14, 1
        %s135 = sand.u32 %s27, 1
        %s136 = scalar_lea.sflag [#allocation3], %s135
        %s137 = sand.u32 %s27, 1
        %s138 = smul.addr %s137, 32
        %s139 = scalar_lea.vmem [#allocation2], %s138
        // Predicated region
        $region29: #{tpu_custom_call.1} parent=27 // pred_check
          %p140 = pneg %p40
        $region30: #{tpu_custom_call.1} parent=27 // pred_check_branch
          %142 = sbr.rel (%p140) target = $region32
        $region31: #{tpu_custom_call.1} parent=27 // pred_region
          %143 = dma.done %s136, 512
        $region32: #{tpu_custom_call.1} parent=27 // pred_fallthru
          _
        %s144 = sand.u32 %s27, 1
        %s145 = scalar_lea.sflag [#allocation3], %s144
        %s146 = sand.u32 %s27, 1
        %s147 = smul.addr %s146, 32
        %s148 = scalar_lea.vmem [#allocation2], %s147
        %p149 = pneg %p40
        %p150 = pneg %p37
        %p151 = pneg %p61
        %p152 = pneg %p58
        %p153 = pneg %p87
        %p154 = pneg %p84
        %s155 = sand.u32 %s74, 1
        %s156 = scalar_lea.sflag [#allocation4], %s155
        %s157 = sand.u32 %s74, 1
        %s158 = smul.addr %s157, 32
        %s159 = scalar_lea.vmem [#allocation5], %s158
        %v161 = vld [vmem:[%s139] sm:$0xff]
        %v162 = vld [vmem:[%s139 + $0x8] sm:$0xff]
        %v163 = vld [vmem:[%s139 + $0x10] sm:$0xff]
        %v164 = vld [vmem:[%s139 + $0x18] sm:$0xff]
        %v165 = vpack.c.bf16 %v161, %v161
        %v166 = vpack.c.bf16 %v162, %v162
        %v167 = vpack.c.bf16 %v163, %v163
        %v168 = vpack.c.bf16 %v164, %v164
        %v169 = vld [vmem:[%s1] sm:$0xff]
        %v170 = vld [vmem:[%s1 + $0x8] sm:$0xff]
        %v171 = vpack.c.bf16 %v170, %v169
        %vm172 = vcmask 64512
        %v174 = vsel %vm172, %v171, 0
        %vm176 = vcmask 1043456
        %v178 = vsel %vm176, %v165, 0
        %v181 = vsel %vm176, %v166, 0
        %v184 = vsel %vm176, %v167, 0
        %v187 = vsel %vm176, %v168, 0
        %189 = vmatprep.subr.bf16.mxu0 %v181
        %190 = vmatpush1.bf16.msra.mxu0 %v178
        %191 = vmatprep.subr.bf16.mxu0 0
        %192 = vmatpush1.bf16.msra.mxu0 0
        %193 = vmatprep.subr.bf16.mxu0 0
        %194 = vmatpush1.bf16.msra.mxu0 0
        %195 = vmatprep.subr.bf16.mxu0 0
        %196 = vmatpush1.bf16.msra.mxu0 0
        %197 = vmatprep.subr.bf16.mxu0 0
        %198 = vmatpush1.bf16.msra.mxu0 0
        %199 = vmatprep.subr.bf16.mxu0 0
        %200 = vmatpush1.bf16.msra.mxu0 0
        %201 = vmatprep.subr.bf16.mxu0 0
        %202 = vmatpush1.bf16.msra.mxu0 0
        %203 = vmatprep.subr.bf16.mxu0 0
        %204 = vmatpush1.bf16.msra.mxu0 0
        %205 = vmatprep.subr.bf16.mxu0 0
        %206 = vmatpush1.bf16.msra.mxu0 0
        %207 = vmatprep.subr.bf16.mxu0 0
        %208 = vmatpush1.bf16.msra.mxu0 0
        %209 = vmatprep.subr.bf16.mxu0 0
        %210 = vmatpush1.bf16.msra.mxu0 0
        %211 = vmatprep.subr.bf16.mxu0 0
        %212 = vmatpush1.bf16.msra.mxu0 0
        %213 = vmatprep.subr.bf16.mxu0 0
        %214 = vmatpush1.bf16.msra.mxu0 0
        %215 = vmatprep.subr.bf16.mxu0 0
        %216 = vmatpush1.bf16.msra.mxu0 0
        %217 = vmatprep.subr.bf16.mxu0 0
        %218 = vmatpush1.bf16.msra.mxu0 0
        %219 = vmatprep.subr.bf16.mxu0 0
        %220 = vmatpush1.bf16.msra.mxu0 0
        %221 = vmatprep.mubr.bf16.mxu0 0
        %222 = vmatmul.mubr.bf16.gmra.mrb[0].mxu0 %v174
        %v223 = vpop.f32.mrb[0].mxu0
        %v224 = vadd.f32 0.0, %v223
        %v225 = vpop.f32.mrb[0].mxu0
        %v226 = vadd.f32 0.0, %v225
        %v227 = vpop.f32.mrb[0].mxu0
        %v228 = vadd.f32 0.0, %v227
        %v229 = vpop.f32.mrb[0].mxu0
        %v230 = vadd.f32 0.0, %v229
        %231 = vdwg.mxu0
        %232 = vmatprep.subr.bf16.mxu0 %v187
        %233 = vmatpush1.bf16.msra.mxu0 %v184
        %234 = vmatprep.subr.bf16.mxu0 0
        %235 = vmatpush1.bf16.msra.mxu0 0
        %236 = vmatprep.subr.bf16.mxu0 0
        %237 = vmatpush1.bf16.msra.mxu0 0
        %238 = vmatprep.subr.bf16.mxu0 0
        %239 = vmatpush1.bf16.msra.mxu0 0
        %240 = vmatprep.subr.bf16.mxu0 0
        %241 = vmatpush1.bf16.msra.mxu0 0
        %242 = vmatprep.subr.bf16.mxu0 0
        %243 = vmatpush1.bf16.msra.mxu0 0
        %244 = vmatprep.subr.bf16.mxu0 0
        %245 = vmatpush1.bf16.msra.mxu0 0
        %246 = vmatprep.subr.bf16.mxu0 0
        %247 = vmatpush1.bf16.msra.mxu0 0
        %248 = vmatprep.subr.bf16.mxu0 0
        %249 = vmatpush1.bf16.msra.mxu0 0
        %250 = vmatprep.subr.bf16.mxu0 0
        %251 = vmatpush1.bf16.msra.mxu0 0
        %252 = vmatprep.subr.bf16.mxu0 0
        %253 = vmatpush1.bf16.msra.mxu0 0
        %254 = vmatprep.subr.bf16.mxu0 0
        %255 = vmatpush1.bf16.msra.mxu0 0
        %256 = vmatprep.subr.bf16.mxu0 0
        %257 = vmatpush1.bf16.msra.mxu0 0
        %258 = vmatprep.subr.bf16.mxu0 0
        %259 = vmatpush1.bf16.msra.mxu0 0
        %260 = vmatprep.subr.bf16.mxu0 0
        %261 = vmatpush1.bf16.msra.mxu0 0
        %262 = vmatprep.subr.bf16.mxu0 0
        %263 = vmatpush1.bf16.msra.mxu0 0
        %264 = vmatprep.mubr.bf16.mxu0 0
        %265 = vmatmul.mubr.bf16.gmra.mrb[0].mxu0 %v174
        %v266 = vpop.f32.mrb[0].mxu0
        %v267 = vadd.f32 0.0, %v266
        %v268 = vpop.f32.mrb[0].mxu0
        %v269 = vadd.f32 0.0, %v268
        %v270 = vpop.f32.mrb[0].mxu0
        %v271 = vadd.f32 0.0, %v270
        %v272 = vpop.f32.mrb[0].mxu0
        %v273 = vadd.f32 0.0, %v272
        %274 = vdwg.mxu0
        %v275 = vadd.f32 %v224, %v226
        %v276 = vadd.f32 %v275, %v267
        %v277 = vadd.f32 %v276, %v269
        %278 = vadd.xlane.f32.xlu0 %v277
        %v279 = vpop.xlane.xlu0 %278
        %v280 = vadd.f32 %v228, %v230
        %v281 = vadd.f32 %v280, %v271
        %v282 = vadd.f32 %v281, %v273
        %283 = vadd.xlane.f32.xlu0 %v282
        %v284 = vpop.xlane.xlu0 %283
        %v285 = vmul.f32 %v279, 0.001953125
        %v286 = vmul.f32 %v284, 0.001953125
        %v287 = vsub.f32 %v224, %v285
        %v288 = vsub.f32 %v226, %v285
        %v289 = vsub.f32 %v267, %v285
        %v290 = vsub.f32 %v269, %v285
        %v291 = vsub.f32 %v228, %v286
        %v292 = vsub.f32 %v230, %v286
        %v293 = vsub.f32 %v271, %v286
        %v294 = vsub.f32 %v273, %v286
        %v295 = vmul.f32 %v287, %v287
        %v296 = vmul.f32 %v288, %v288
        %v297 = vmul.f32 %v289, %v289
        %v298 = vmul.f32 %v290, %v290
        %v299 = vmul.f32 %v291, %v291
        %v300 = vmul.f32 %v292, %v292
        %v301 = vmul.f32 %v293, %v293
        %v302 = vmul.f32 %v294, %v294
        %v303 = vadd.f32 %v295, %v296
        %v304 = vadd.f32 %v303, %v297
        %v305 = vadd.f32 %v304, %v298
        %306 = vadd.xlane.f32.xlu0 %v305
        %v307 = vpop.xlane.xlu0 %306
        %v308 = vadd.f32 %v299, %v300
        %v309 = vadd.f32 %v308, %v301
        %v310 = vadd.f32 %v309, %v302
        %311 = vadd.xlane.f32.xlu0 %v310
        %v312 = vpop.xlane.xlu0 %311
        %v313 = vmul.f32 %v307, 0.001953125
        %v314 = vmul.f32 %v312, 0.001953125
        %v315 = vadd.f32 %v313, 1e-05
        %v316 = vadd.f32 %v314, 1e-05
        %v317 = vrsqrt.pop %v315
        %v318 = vrsqrt.pop %v316
        %v319 = vmul.f32 %v287, %v317
        %v320 = vmul.f32 %v288, %v317
        %v321 = vmul.f32 %v289, %v317
        %v322 = vmul.f32 %v290, %v317
        %v323 = vmul.f32 %v291, %v318
        %v324 = vmul.f32 %v292, %v318
        %v325 = vmul.f32 %v293, %v318
        %v326 = vmul.f32 %v294, %v318
        %vm327 = vcmp.ge.f32.partialorder %v319, 0.0
        %vm328 = vcmp.ge.f32.partialorder %v320, 0.0
        %vm329 = vcmp.ge.f32.partialorder %v321, 0.0
        %vm330 = vcmp.ge.f32.partialorder %v322, 0.0
        %vm331 = vcmp.ge.f32.partialorder %v323, 0.0
        %vm332 = vcmp.ge.f32.partialorder %v324, 0.0
        %vm333 = vcmp.ge.f32.partialorder %v325, 0.0
        %vm334 = vcmp.ge.f32.partialorder %v326, 0.0
        %v335 = vmul.f32 %v319, 0.01
        %v336 = vmul.f32 %v320, 0.01
        %v337 = vmul.f32 %v321, 0.01
        %v338 = vmul.f32 %v322, 0.01
        %v339 = vmul.f32 %v323, 0.01
        %v340 = vmul.f32 %v324, 0.01
        %v341 = vmul.f32 %v325, 0.01
        %v342 = vmul.f32 %v326, 0.01
        %v343 = vsel %vm327, %v319, %v335
        %v344 = vsel %vm328, %v320, %v336
        %v345 = vsel %vm329, %v321, %v337
        %v346 = vsel %vm330, %v322, %v338
        %v347 = vsel %vm331, %v323, %v339
        %v348 = vsel %vm332, %v324, %v340
        %v349 = vsel %vm333, %v325, %v341
        %v350 = vsel %vm334, %v326, %v342
        %v351 = vpack.c.bf16 %v347, %v343
        %v352 = vpack.c.bf16 %v348, %v344
        %v353 = vpack.c.bf16 %v349, %v345
        %v354 = vpack.c.bf16 %v350, %v346
        %v359 = vunpack.c.l.b16 %v351
        %v360 = vunpack.c.l.b16 %v352
        %v361 = vunpack.c.l.b16 %v353
        %v362 = vunpack.c.l.b16 %v354
        %v363 = vunpack.c.h.b16 %v351
        %v364 = vunpack.c.h.b16 %v352
        %v365 = vunpack.c.h.b16 %v353
        %v366 = vunpack.c.h.b16 %v354
        %v367 = vpack.c.b16 %v360, %v359
        %v368 = vpack.c.b16 %v362, %v361
        %v369 = vpack.c.b16 %v364, %v363
        %v370 = vpack.c.b16 %v366, %v365
        %375 = vst [vmem:[%s159] sm:$0xff] %v367
        %376 = vst [vmem:[%s159 + $0x8] sm:$0xff] %v368
        %377 = vst [vmem:[%s159 + $0x10] sm:$0xff] %v369
        %378 = vst [vmem:[%s159 + $0x18] sm:$0xff] %v370
        %s379 = sand.u32 %s74, 1
        %s380 = scalar_lea.sflag [#allocation4], %s379
        %s381 = sand.u32 %s74, 1
        %s382 = smul.addr %s381, 32
        %s383 = scalar_lea.vmem [#allocation5], %s382
        // Predicated region
        $region33: #{tpu_custom_call.1} parent=27 // pred_check
          %p384 = pneg %p84
        $region34: #{tpu_custom_call.1} parent=27 // pred_check_branch
          %386 = sbr.rel (%p384) target = $region36
        $region35: #{tpu_custom_call.1} parent=27 // pred_region
          %s388 = ssub.s32 512, 512
          %389 = vsyncadd %s380, %s388
          %s390 = smul.addr %s19, 8
          %s391 = smul.addr %s390, 64
          %s392 = scalar_lea.hbm %s2, %s391
          %s393 = sshll.u32 %s383, 4
          %s394 = int_to_ptr.vmem [resolvable:$true] %s393
          %399 = dma.vmem_to_hbm [thread:$0]  %s394, 512, %s392, %s380, 256, 256, 16
        $region36: #{tpu_custom_call.1} parent=27 // pred_fallthru
          _
      $region28: #{tpu_custom_call.1} parent=5 // pred_fallthru
        _
      %p400 = scmp.le.s32.totalorder 2, %s14
      // Predicated region
      $region37: #{tpu_custom_call.1} parent=5 // pred_check
        %p401 = pneg %p400
      $region38: #{tpu_custom_call.1} parent=5 // pred_check_branch
        %403 = sbr.rel (%p401) target = $region40
      $region39: #{tpu_custom_call.1} parent=5 // pred_region
        %s404 = ssub.s32 %s14, 2
        // Predicated region
        $region41: #{tpu_custom_call.1} parent=39 // pred_check
          %p405 = pneg %p90
        $region42: #{tpu_custom_call.1} parent=39 // pred_check_branch
          %407 = sbr.rel (%p405) target = $region44
        $region43: #{tpu_custom_call.1} parent=39 // pred_region
          %s408 = sand.u32 %s75, 1
          %s409 = scalar_lea.sflag [#allocation4], %s408
          %s410 = sand.u32 %s75, 1
          %s411 = smul.addr %s410, 32
          %s412 = scalar_lea.vmem [#allocation5], %s411
          %413 = dma.done %s409, 512
        $region44: #{tpu_custom_call.1} parent=39 // pred_fallthru
          _
      $region40: #{tpu_custom_call.1} parent=5 // pred_fallthru
        _
    $region6: #{tpu_custom_call.1} parent=1 // loop_footer
      %s18 = sadd.s32 1, %s14
    $region7: #{tpu_custom_call.1} parent=1 // loop_footer_branch
      %13 = sbr.rel target = $region3
    $region8: #{tpu_custom_call.1} parent=1 // loop_exit
      _
    %414 = vsyncpa [#allocation3], 1
    %s415 = scalar_lea.sflag [#allocation3], 1
    %416 = vsyncpa %s415, 1
    %417 = vsyncpa [#allocation4], 1
    %s418 = scalar_lea.sflag [#allocation4], 1
    %419 = vsyncpa %s418, 1

</llo_original>
